<compile_context>
chip_gen: v5e
topology: v5e:2x2
jax: 0.10.0
libtpu: 0.0.40
codegen_flags: <defaults>
</compile_context>

<pallas_src>
import functools

import jax
import jax.numpy as jnp
from jax.experimental import pallas as pl
from jax.experimental.pallas import tpu as pltpu


def _round_up(n, m):
    return ((n + m - 1) // m) * m


def _residual_block_kernel(x_ref, w1s_ref, b1s_ref, w2_ref, o_ref, *, identity_skip):
    # x_ref:   (TB, F_in_pad)                            bf16
    # w1s_ref: (F_in_pad, 2*F_pad) or (F_in_pad, F_pad)  bf16   -> [w1 | w_skip] or [w1]
    # b1s_ref: (1, 2*F_pad)                              f32    -> [b1 | skip_bias (+ b2)]
    # w2_ref:  (F_pad, F_pad)                            bf16
    # o_ref:   (TB, F_pad)                               out dtype
    f_pad = w2_ref.shape[0]
    x = x_ref[...]
    b1s = b1s_ref[...]

    if identity_skip:
        # Single GEMM for linear1; the residual is the (zero-padded) input itself, b2 folded
        # into the second half of the bias ref.
        h = jnp.dot(x, w1s_ref[...], preferred_element_type=jnp.float32) + b1s[:, :f_pad]
        h = jnp.maximum(h, 0.0)
        skip = x.astype(jnp.float32) + b1s[:, f_pad:]
    else:
        # One lane-dense GEMM computes both linear1 and the skip projection.
        hs = jnp.dot(x, w1s_ref[...], preferred_element_type=jnp.float32) + b1s
        h = jnp.maximum(hs[:, :f_pad], 0.0)        # ReLU(linear1)
        skip = hs[:, f_pad:]                        # skip projection (+ b2 folded in)

    # TODO(synk): dropout is identity in eval mode; training-mode masking (prng mask +
    # 1/(1-p) scaling) is intentionally not implemented here.
    out = jnp.dot(h.astype(jnp.bfloat16), w2_ref[...],
                  preferred_element_type=jnp.float32) + skip
    o_ref[...] = jnp.maximum(out, 0.0).astype(o_ref.dtype)


def pack_residual_block_params(w1, b1, w2, b2, ws=None, bs=None):
    """Pad / fuse / cast the weights ONCE (hoisted out of the per-call path).

    w1: (F_in, F_out), b1: (F_out,)          -- linear1
    w2: (F_out, F_out), b2: (F_out,)         -- linear2
    ws/bs: skip Linear params, or None for identity skip (requires F_in == F_out).
    """
    F_in, F_out = w1.shape
    identity_skip = ws is None
    if identity_skip:
        assert F_in == F_out, "identity skip requires in_features == out_features"

    F_in_pad = _round_up(F_in, 128)   # lane-dense contraction dim
    F_pad = _round_up(F_out, 128)     # lane-dense hidden / output dim

    b1 = jnp.reshape(b1, (1, F_out)).astype(jnp.float32)
    b2 = jnp.reshape(b2, (1, F_out)).astype(jnp.float32)

    def pad_cols(a, cols):
        return jnp.pad(a, ((0, 0), (0, cols - a.shape[1])))

    def pad_w(w):  # (F_in, F_out) -> (F_in_pad, F_pad)
        return jnp.pad(w, ((0, F_in_pad - F_in), (0, F_pad - F_out)))

    if identity_skip:
        w1s = pad_w(w1).astype(jnp.bfloat16)
        b1s = jnp.concatenate([pad_cols(b1, F_pad), pad_cols(b2, F_pad)], axis=1)
    else:
        bs = jnp.reshape(bs, (1, F_out)).astype(jnp.float32)
        w1s = jnp.concatenate([pad_w(w1), pad_w(ws)], axis=1).astype(jnp.bfloat16)
        b1s = jnp.concatenate([pad_cols(b1, F_pad), pad_cols(bs + b2, F_pad)], axis=1)

    w2p = jnp.pad(w2, ((0, F_pad - F_out), (0, F_pad - F_out))).astype(jnp.bfloat16)

    return dict(w1s=w1s, b1s=b1s.astype(jnp.float32), w2=w2p,
                F_in=F_in, F_out=F_out, F_in_pad=F_in_pad, F_pad=F_pad,
                identity_skip=identity_skip)


def _vmem_capacity_bytes():
    try:
        return int(pltpu.get_tpu_info().vmem_capacity_bytes)
    except Exception:
        return 64 * 1024 * 1024   # conservative: v7x per-TensorCore VMEM


def _default_tile_b():
    try:
        kind = jax.devices()[0].device_kind.lower()
    except Exception:
        kind = ""
    # v5's MXU is 4x(128x128): 128 rows already saturate it and halve f32 intermediates.
    return 128 if "v5" in kind else 256


def residual_block_apply(x, params, *, tile_b=None, out_dtype=jnp.float32):
    """Fused ResidualBlock forward (eval mode) using pre-packed params."""
    B, F_in = x.shape
    assert F_in == params["F_in"], "input feature dim mismatch"
    F_in_pad, F_pad, F_out = params["F_in_pad"], params["F_pad"], params["F_out"]
    w1s, b1s, w2 = params["w1s"], params["b1s"], params["w2"]
    identity_skip = params["identity_skip"]

    if tile_b is None:
        tile_b = _default_tile_b()

    # Batch tiling: >=2 tiles when the batch allows (keeps both v7x TensorCores busy via the
    # "parallel" axis), 16-row granularity (bf16 sublane packing), minimal pad waste.
    n_tiles = max(1, pl.cdiv(B, tile_b))
    if B > 16:
        n_tiles = max(n_tiles, 2)
    tb = _round_up(pl.cdiv(B, n_tiles), 16)
    B_pad = _round_up(B, tb)
    grid = (B_pad // tb,)

    xp = jnp.pad(x, ((0, B_pad - B), (0, F_in_pad - F_in))).astype(jnp.bfloat16)

    # VMEM budget: weights single-buffered (constant block index), x/out double-buffered,
    # plus the in-register/VMEM f32 intermediates (hs / h / skip / out).
    out_itemsize = jnp.dtype(out_dtype).itemsize
    w_bytes = (w1s.size * w1s.dtype.itemsize + w2.size * w2.dtype.itemsize
               + b1s.size * b1s.dtype.itemsize)
    act_bytes = 2 * tb * F_in_pad * 2 + 2 * tb * F_pad * out_itemsize
    interm_bytes = tb * (4 * w1s.shape[1] + 12 * F_pad)
    needed = w_bytes + act_bytes + interm_bytes
    cap = _vmem_capacity_bytes()
    vmem_limit = int(min(max(needed + (4 << 20), 32 << 20), int(cap * 0.9)))

    kernel = functools.partial(_residual_block_kernel, identity_skip=identity_skip)

    def call(single_buffer_weights):
        def wspec(shape):
            if single_buffer_weights:
                return pl.BlockSpec(shape, lambda i: (0, 0), pipeline_mode=pl.Buffered(1))
            return pl.BlockSpec(shape, lambda i: (0, 0))

        return pl.pallas_call(
            kernel,
            out_shape=jax.ShapeDtypeStruct((B_pad, F_pad), out_dtype),
            grid_spec=pltpu.PrefetchScalarGridSpec(
                num_scalar_prefetch=0,
                grid=grid,
                in_specs=[
                    pl.BlockSpec((tb, F_in_pad), lambda i: (i, 0)),   # x tile
                    wspec(w1s.shape),                                 # [w1 | ws] (or [w1])
                    wspec(b1s.shape),                                 # [b1 | bs+b2]
                    wspec(w2.shape),                                  # w2
                ],
                out_specs=pl.BlockSpec((tb, F_pad), lambda i: (i, 0)),
            ),
            compiler_params=pltpu.CompilerParams(
                dimension_semantics=("parallel",),
                vmem_limit_bytes=vmem_limit,
            ),
        )(xp, w1s, b1s, w2)

    try:
        out = call(True)    # single-buffered resident weights (halves weight VMEM)
    except Exception:
        out = call(False)   # graceful fallback to default double-buffering
    return out[:B, :F_out]


def residual_block(x, w1, b1, w2, b2, ws=None, bs=None, *, tile_b=None,
                   out_dtype=jnp.float32):
    """Convenience one-shot API (packs weights per call; prefer pack+apply for reuse)."""
    params = pack_residual_block_params(w1, b1, w2, b2, ws, bs)
    return residual_block_apply(x, params, tile_b=tile_b, out_dtype=out_dtype)


def _init_linear(key, fan_in, fan_out):
    """PyTorch-style uniform init U(-1/sqrt(fan_in), 1/sqrt(fan_in)).
    Returns weight transposed to (fan_in, fan_out) plus bias (1, fan_out)."""
    kw, kb = jax.random.split(key)
    bound = 1.0 / jnp.sqrt(fan_in)
    w = jax.random.uniform(kw, (fan_in, fan_out), jnp.float32, -bound, bound)
    b = jax.random.uniform(kb, (1, fan_out), jnp.float32, -bound, bound)
    return w, b


if __name__ == "__main__":
    key = jax.random.PRNGKey(0)
    k_x, k_l1, k_l2, k_sk, k_l1i, k_l2i = jax.random.split(key, 6)

    B = 16
    in_features = 32
    out_features = 64
    dropout_p = 0.1  # unused at inference (eval mode => identity)

    bf = jnp.bfloat16

    # ---- case 1: in_features != out_features  ->  Linear skip projection ----
    x = jax.random.normal(k_x, (B, in_features), jnp.float32)
    w1, b1 = _init_linear(k_l1, in_features, out_features)    # linear1
    w2, b2 = _init_linear(k_l2, out_features, out_features)   # linear2
    ws, bs = _init_linear(k_sk, in_features, out_features)    # skip projection

    params = pack_residual_block_params(w1, b1, w2, b2, ws, bs)  # hoisted: pack ONCE
    y = jax.block_until_ready(residual_block_apply(x, params))

    xb = x.astype(bf)
    h_ref = jnp.maximum(
        jnp.dot(xb, w1.astype(bf), preferred_element_type=jnp.float32) + b1, 0.0)
    skip_ref = jnp.dot(xb, ws.astype(bf), preferred_element_type=jnp.float32) + bs
    y_ref = jnp.maximum(
        jnp.dot(h_ref.astype(bf), w2.astype(bf), preferred_element_type=jnp.float32)
        + b2 + skip_ref, 0.0)
    assert y.shape == (B, out_features)
    assert jnp.allclose(y, y_ref, atol=2e-2, rtol=2e-2), float(jnp.max(jnp.abs(y - y_ref)))

    # ---- case 2: in_features == out_features  ->  identity skip (no eye() GEMM) ----
    x2 = jax.random.normal(k_x, (B, out_features), jnp.float32)
    w1i, b1i = _init_linear(k_l1i, out_features, out_features)
    w2i, b2i = _init_linear(k_l2i, out_features, out_features)

    params_i = pack_residual_block_params(w1i, b1i, w2i, b2i)    # ws=None -> identity skip
    y2 = jax.block_until_ready(residual_block_apply(x2, params_i))

    x2b = x2.astype(bf)
    h2_ref = jnp.maximum(
        jnp.dot(x2b, w1i.astype(bf), preferred_element_type=jnp.float32) + b1i, 0.0)
    y2_ref = jnp.maximum(
        jnp.dot(h2_ref.astype(bf), w2i.astype(bf), preferred_element_type=jnp.float32)
        + b2i + x2b.astype(jnp.float32), 0.0)
    assert y2.shape == (B, out_features)
    assert jnp.allclose(y2, y2_ref, atol=2e-2, rtol=2e-2), float(jnp.max(jnp.abs(y2 - y2_ref)))

    print("KERNEL_OK")
</pallas_src>

<mosaic_0001>
module attributes {stable_mosaic.version = 11 : i64} {
  func.func @_residual_block_kernel(%arg0: i32, %arg1: memref<16x128xbf16, #tpu.memory_space<vmem>>, %arg2: memref<128x256xbf16, #tpu.memory_space<vmem>>, %arg3: memref<1x256xf32, #tpu.memory_space<vmem>>, %arg4: memref<128x128xbf16, #tpu.memory_space<vmem>>, %arg5: memref<16x128xf32, #tpu.memory_space<vmem>>) attributes {dimension_semantics = [#tpu.dimension_semantics<parallel>], iteration_bounds = array<i64: 1>, scalar_prefetch = 0 : i64, scratch_operands = 0 : i64, tpu.core_type = #tpu.core_type<tc>, window_params = [{transform_indices = @transform_0, window_bounds = array<i64: 16, 128>}, {pipeline_mode = #tpu.pipeline_mode<synchronous>, transform_indices = @transform_1, window_bounds = array<i64: 128, 256>}, {pipeline_mode = #tpu.pipeline_mode<synchronous>, transform_indices = @transform_2, window_bounds = array<i64: 1, 256>}, {pipeline_mode = #tpu.pipeline_mode<synchronous>, transform_indices = @transform_3, window_bounds = array<i64: 128, 128>}, {transform_indices = @transform_4, window_bounds = array<i64: 16, 128>}]} {
    %c0 = arith.constant 0 : index
    %c0_0 = arith.constant 0 : index
    %0 = vector.load %arg1[%c0, %c0_0] : memref<16x128xbf16, #tpu.memory_space<vmem>>, vector<16x128xbf16>
    %c0_1 = arith.constant 0 : index
    %c0_2 = arith.constant 0 : index
    %1 = vector.load %arg3[%c0_1, %c0_2] : memref<1x256xf32, #tpu.memory_space<vmem>>, vector<1x256xf32>
    %c0_3 = arith.constant 0 : index
    %c0_4 = arith.constant 0 : index
    %2 = vector.load %arg2[%c0_3, %c0_4] : memref<128x256xbf16, #tpu.memory_space<vmem>>, vector<128x256xbf16>
    %cst = arith.constant dense<0.000000e+00> : vector<16x256xf32>
    %3 = tpu.matmul %0, %2, %cst {dimension_numbers = #tpu.dot_dimension_numbers<[1], [0], [0], [1], [0, 0, 1, 1], [], []>} : vector<16x128xbf16>, vector<128x256xbf16>, vector<16x256xf32> -> vector<16x256xf32>
    %4 = vector.broadcast %1 : vector<1x256xf32> to vector<16x256xf32>
    %5 = arith.addf %3, %4 : vector<16x256xf32>
    %6 = vector.extract_strided_slice %5 {offsets = [0, 0], sizes = [16, 128], strides = [1, 1]} : vector<16x256xf32> to vector<16x128xf32>
    %cst_5 = arith.constant 0.000000e+00 : f32
    %7 = vector.broadcast %cst_5 : f32 to vector<16x128xf32>
    %8 = arith.maximumf %6, %7 : vector<16x128xf32>
    %9 = vector.extract_strided_slice %5 {offsets = [0, 128], sizes = [16, 128], strides = [1, 1]} : vector<16x256xf32> to vector<16x128xf32>
    %10 = arith.truncf %8 : vector<16x128xf32> to vector<16x128xbf16>
    %c0_6 = arith.constant 0 : index
    %c0_7 = arith.constant 0 : index
    %11 = vector.load %arg4[%c0_6, %c0_7] : memref<128x128xbf16, #tpu.memory_space<vmem>>, vector<128x128xbf16>
    %cst_8 = arith.constant dense<0.000000e+00> : vector<16x128xf32>
    %12 = tpu.matmul %10, %11, %cst_8 {dimension_numbers = #tpu.dot_dimension_numbers<[1], [0], [0], [1], [0, 0, 1, 1], [], []>} : vector<16x128xbf16>, vector<128x128xbf16>, vector<16x128xf32> -> vector<16x128xf32>
    %13 = arith.addf %12, %9 : vector<16x128xf32>
    %cst_9 = arith.constant 0.000000e+00 : f32
    %14 = vector.broadcast %cst_9 : f32 to vector<16x128xf32>
    %15 = arith.maximumf %13, %14 : vector<16x128xf32>
    %c0_10 = arith.constant 0 : index
    %c0_11 = arith.constant 0 : index
    %16 = vector.load %arg5[%c0_10, %c0_11] : memref<16x128xf32, #tpu.memory_space<vmem>>, vector<16x128xf32>
    tpu.vector_store %arg5[%c0_10, %c0_11], %15 {strides = array<i32>} : memref<16x128xf32, #tpu.memory_space<vmem>>, vector<16x128xf32>,
    return
  }
  func.func @transform_0(%arg0: i32) -> (i32, i32) {
    %c0_i32 = arith.constant 0 : i32
    %c0_i32_0 = arith.constant 0 : i32
    return %arg0, %c0_i32 : i32, i32
  }
  func.func @transform_1(%arg0: i32) -> (i32, i32) {
    %c0_i32 = arith.constant 0 : i32
    %c0_i32_0 = arith.constant 0 : i32
    %c0_i32_1 = arith.constant 0 : i32
    return %c0_i32, %c0_i32_0 : i32, i32
  }
  func.func @transform_2(%arg0: i32) -> (i32, i32) {
    %c0_i32 = arith.constant 0 : i32
    %c0_i32_0 = arith.constant 0 : i32
    %c0_i32_1 = arith.constant 0 : i32
    return %c0_i32, %c0_i32_0 : i32, i32
  }
  func.func @transform_3(%arg0: i32) -> (i32, i32) {
    %c0_i32 = arith.constant 0 : i32
    %c0_i32_0 = arith.constant 0 : i32
    %c0_i32_1 = arith.constant 0 : i32
    return %c0_i32, %c0_i32_0 : i32, i32
  }
  func.func @transform_4(%arg0: i32) -> (i32, i32) {
    %c0_i32 = arith.constant 0 : i32
    %c0_i32_0 = arith.constant 0 : i32
    return %arg0, %c0_i32 : i32, i32
  }
}

module attributes {stable_mosaic.version = 11 : i64} {
  func.func @_residual_block_kernel(%arg0: i32, %arg1: memref<16x128xbf16, #tpu.memory_space<vmem>>, %arg2: memref<128x256xbf16, #tpu.memory_space<vmem>>, %arg3: memref<1x256xf32, #tpu.memory_space<vmem>>, %arg4: memref<128x128xbf16, #tpu.memory_space<vmem>>, %arg5: memref<16x128xf32, #tpu.memory_space<vmem>>) attributes {dimension_semantics = [#tpu.dimension_semantics<parallel>], iteration_bounds = array<i64: 1>, scalar_prefetch = 0 : i64, scratch_operands = 0 : i64, tpu.core_type = #tpu.core_type<tc>, window_params = [{transform_indices = @transform_0, window_bounds = array<i64: 16, 128>}, {pipeline_mode = #tpu.pipeline_mode<synchronous>, transform_indices = @transform_1, window_bounds = array<i64: 128, 256>}, {pipeline_mode = #tpu.pipeline_mode<synchronous>, transform_indices = @transform_2, window_bounds = array<i64: 1, 256>}, {pipeline_mode = #tpu.pipeline_mode<synchronous>, transform_indices = @transform_3, window_bounds = array<i64: 128, 128>}, {transform_indices = @transform_4, window_bounds = array<i64: 16, 128>}]} {
    %c0 = arith.constant 0 : index
    %c0_0 = arith.constant 0 : index
    %0 = vector.load %arg1[%c0, %c0_0] : memref<16x128xbf16, #tpu.memory_space<vmem>>, vector<16x128xbf16>
    %c0_1 = arith.constant 0 : index
    %c0_2 = arith.constant 0 : index
    %1 = vector.load %arg3[%c0_1, %c0_2] : memref<1x256xf32, #tpu.memory_space<vmem>>, vector<1x256xf32>
    %c0_3 = arith.constant 0 : index
    %c0_4 = arith.constant 0 : index
    %2 = vector.load %arg2[%c0_3, %c0_4] : memref<128x256xbf16, #tpu.memory_space<vmem>>, vector<128x256xbf16>
    %cst = arith.constant dense<0.000000e+00> : vector<16x256xf32>
    %3 = tpu.matmul %0, %2, %cst {dimension_numbers = #tpu.dot_dimension_numbers<[1], [0], [0], [1], [0, 0, 1, 1], [], []>} : vector<16x128xbf16>, vector<128x256xbf16>, vector<16x256xf32> -> vector<16x256xf32>
    %4 = vector.broadcast %1 : vector<1x256xf32> to vector<16x256xf32>
    %5 = arith.addf %3, %4 : vector<16x256xf32>
    %6 = vector.extract_strided_slice %5 {offsets = [0, 0], sizes = [16, 128], strides = [1, 1]} : vector<16x256xf32> to vector<16x128xf32>
    %cst_5 = arith.constant 0.000000e+00 : f32
    %7 = vector.broadcast %cst_5 : f32 to vector<16x128xf32>
    %8 = arith.maximumf %6, %7 : vector<16x128xf32>
    %9 = vector.extract_strided_slice %5 {offsets = [0, 128], sizes = [16, 128], strides = [1, 1]} : vector<16x256xf32> to vector<16x128xf32>
    %10 = arith.truncf %8 : vector<16x128xf32> to vector<16x128xbf16>
    %c0_6 = arith.constant 0 : index
    %c0_7 = arith.constant 0 : index
    %11 = vector.load %arg4[%c0_6, %c0_7] : memref<128x128xbf16, #tpu.memory_space<vmem>>, vector<128x128xbf16>
    %cst_8 = arith.constant dense<0.000000e+00> : vector<16x128xf32>
    %12 = tpu.matmul %10, %11, %cst_8 {dimension_numbers = #tpu.dot_dimension_numbers<[1], [0], [0], [1], [0, 0, 1, 1], [], []>} : vector<16x128xbf16>, vector<128x128xbf16>, vector<16x128xf32> -> vector<16x128xf32>
    %13 = arith.addf %12, %9 : vector<16x128xf32>
    %cst_9 = arith.constant 0.000000e+00 : f32
    %14 = vector.broadcast %cst_9 : f32 to vector<16x128xf32>
    %15 = arith.maximumf %13, %14 : vector<16x128xf32>
    %c0_10 = arith.constant 0 : index
    %c0_11 = arith.constant 0 : index
    %16 = vector.load %arg5[%c0_10, %c0_11] : memref<16x128xf32, #tpu.memory_space<vmem>>, vector<16x128xf32>
    tpu.vector_store %arg5[%c0_10, %c0_11], %15 {strides = array<i32>} : memref<16x128xf32, #tpu.memory_space<vmem>>, vector<16x128xf32>,
    return
  }
  func.func @transform_0(%arg0: i32) -> (i32, i32) {
    %c0_i32 = arith.constant 0 : i32
    %c0_i32_0 = arith.constant 0 : i32
    return %arg0, %c0_i32 : i32, i32
  }
  func.func @transform_1(%arg0: i32) -> (i32, i32) {
    %c0_i32 = arith.constant 0 : i32
    %c0_i32_0 = arith.constant 0 : i32
    %c0_i32_1 = arith.constant 0 : i32
    return %c0_i32, %c0_i32_0 : i32, i32
  }
  func.func @transform_2(%arg0: i32) -> (i32, i32) {
    %c0_i32 = arith.constant 0 : i32
    %c0_i32_0 = arith.constant 0 : i32
    %c0_i32_1 = arith.constant 0 : i32
    return %c0_i32, %c0_i32_0 : i32, i32
  }
  func.func @transform_3(%arg0: i32) -> (i32, i32) {
    %c0_i32 = arith.constant 0 : i32
    %c0_i32_0 = arith.constant 0 : i32
    %c0_i32_1 = arith.constant 0 : i32
    return %c0_i32, %c0_i32_0 : i32, i32
  }
  func.func @transform_4(%arg0: i32) -> (i32, i32) {
    %c0_i32 = arith.constant 0 : i32
    %c0_i32_0 = arith.constant 0 : i32
    return %arg0, %c0_i32 : i32, i32
  }
}

</mosaic_0001>

<llo_original>
// kernel: tpu_custom_call.1
$region0: #{tpu_custom_call.1}
  #allocation0 [shape = 'u32[]', space=smem, size = 0x4, offset = 0x4, fixed_abs, tag = 'smem constant byte address 0x4 - core index']
  #allocation1 [shape = 'u32[72,128]{1,0:T(1,128)}', space=vmem, size = 0x9000, scoped, tag = 'internal scratch']
  %s0 = inlined_call_operand.hbm [shape: bf16[16,128], index: 0, kind: input, shape index: {}]
  %s1 = inlined_call_operand.hbm [shape: bf16[128,256], index: 1, kind: input, shape index: {}]
  %s2 = inlined_call_operand.hbm [shape: f32[1,256], index: 2, kind: input, shape index: {}]
  %s3 = inlined_call_operand.hbm [shape: bf16[128,128], index: 3, kind: input, shape index: {}]
  %s4 = inlined_call_operand.hbm [shape: f32[16,128], index: 4, kind: output, shape index: {}]
  %s5 = sld [smem:[#allocation0]]
  $region42: #{tpu_custom_call.1} parent=0
    _
  %s7 = ssub.s32 1, %s5
  %s8 = scalar_select 0, %s7, %s5
  $region1: #{tpu_custom_call.1} parent=0
    #allocation2 [shape = 'u8[4096]{0}', space=vmem, size = 0x1000, scoped, tag = 'input window, operand 0, single buffered']
    #allocation3 [shape = 's32[1]{0}', space=sflag, size = 0x4, scoped, tag = 'scoped memory for tpu_custom_call.1']
    #allocation4 [shape = 's32[1]{0}', space=sflag, size = 0x4, scoped, tag = 'scoped memory for tpu_custom_call.1']
    #allocation5 [shape = 'u8[65536]{0}', space=vmem, size = 0x10000, scoped, tag = 'input window, operand 1, single buffered']
    #allocation6 [shape = 's32[1]{0}', space=sflag, size = 0x4, scoped, tag = 'scoped memory for tpu_custom_call.1']
    #allocation7 [shape = 'u8[1024]{0}', space=vmem, size = 0x400, scoped, tag = 'input window, operand 2, single buffered']
    #allocation8 [shape = 'u8[32768]{0}', space=vmem, size = 0x8000, scoped, tag = 'input window, operand 3, single buffered']
    #allocation9 [shape = 's32[1]{0}', space=sflag, size = 0x4, scoped, tag = 'scoped memory for tpu_custom_call.1']
    #allocation10 [shape = 'u8[8192]{0}', space=vmem, size = 0x2000, scoped, tag = 'output window, operand 0, single buffered']
    %9 = vsyncpa [#allocation3], 0
    %10 = vsyncpa [#allocation6], 0
    %11 = vsyncpa [#allocation9], 0
    %12 = vsyncpa [#allocation4], 0
    // Predicated region
    $region2: #{tpu_custom_call.1} parent=1 // pred_check
      _
    $region3: #{tpu_custom_call.1} parent=1 // pred_check_branch
      %14 = sbr.rel (0) target = $region5
    $region4: #{tpu_custom_call.1} parent=1 // pred_region
      %16 = vsyncadd [#allocation3], 0
      %s17 = sshll.u32 %s0, 4
      %s18 = int_to_ptr.hbm [resolvable:$true] %s17
      %s19 = sshll.u32 [#allocation2], 4
      %s20 = int_to_ptr.vmem [resolvable:$true] %s19
      %25 = dma.hbm_to_vmem [thread:$0]  %s18, 128, %s20, [#allocation3], 64, 64, 4
    $region5: #{tpu_custom_call.1} parent=1 // pred_fallthru
      _
    // Predicated region
    $region6: #{tpu_custom_call.1} parent=1 // pred_check
      _
    $region7: #{tpu_custom_call.1} parent=1 // pred_check_branch
      %27 = sbr.rel (0) target = $region9
    $region8: #{tpu_custom_call.1} parent=1 // pred_region
      %29 = vsyncadd [#allocation6], 0
      %s30 = sshll.u32 %s1, 4
      %s31 = int_to_ptr.hbm [resolvable:$true] %s30
      %s32 = sshll.u32 [#allocation5], 4
      %s33 = int_to_ptr.vmem [resolvable:$true] %s32
      %38 = dma.hbm_to_vmem [thread:$0]  %s31, 2048, %s33, [#allocation6], 128, 128, 8
    $region9: #{tpu_custom_call.1} parent=1 // pred_fallthru
      _
    // Predicated region
    $region10: #{tpu_custom_call.1} parent=1 // pred_check
      _
    $region11: #{tpu_custom_call.1} parent=1 // pred_check_branch
      %40 = sbr.rel (0) target = $region13
    $region12: #{tpu_custom_call.1} parent=1 // pred_region
      %42 = vsyncadd [#allocation6], 0
      %s44 = sshll.u32 %s2, 4
      %s45 = int_to_ptr.hbm [resolvable:$true] %s44
      %s46 = sshll.u32 [#allocation7], 4
      %s47 = int_to_ptr.vmem [resolvable:$true] %s46
      %49 = dma.hbm_to_vmem [thread:$0]  %s45, 32, %s47, [#allocation6]
    $region13: #{tpu_custom_call.1} parent=1 // pred_fallthru
      _
    // Predicated region
    $region14: #{tpu_custom_call.1} parent=1 // pred_check
      _
    $region15: #{tpu_custom_call.1} parent=1 // pred_check_branch
      %51 = sbr.rel (0) target = $region17
    $region16: #{tpu_custom_call.1} parent=1 // pred_region
      %53 = vsyncadd [#allocation9], 0
      %s54 = sshll.u32 %s3, 4
      %s55 = int_to_ptr.hbm [resolvable:$true] %s54
      %s56 = sshll.u32 [#allocation8], 4
      %s57 = int_to_ptr.vmem [resolvable:$true] %s56
      %62 = dma.hbm_to_vmem [thread:$0]  %s55, 1024, %s57, [#allocation9], 64, 64, 4
    $region17: #{tpu_custom_call.1} parent=1 // pred_fallthru
      _
    // Predicated region
    $region18: #{tpu_custom_call.1} parent=1 // pred_check
      _
    $region19: #{tpu_custom_call.1} parent=1 // pred_check_branch
      %64 = sbr.rel (0) target = $region21
    $region20: #{tpu_custom_call.1} parent=1 // pred_region
      %66 = dma.done [#allocation3], 128
    $region21: #{tpu_custom_call.1} parent=1 // pred_fallthru
      _
    // Predicated region
    $region22: #{tpu_custom_call.1} parent=1 // pred_check
      _
    $region23: #{tpu_custom_call.1} parent=1 // pred_check_branch
      %68 = sbr.rel (0) target = $region25
    $region24: #{tpu_custom_call.1} parent=1 // pred_region
      %70 = dma.done [#allocation6], 2048
    $region25: #{tpu_custom_call.1} parent=1 // pred_fallthru
      _
    // Predicated region
    $region26: #{tpu_custom_call.1} parent=1 // pred_check
      _
    $region27: #{tpu_custom_call.1} parent=1 // pred_check_branch
      %72 = sbr.rel (0) target = $region29
    $region28: #{tpu_custom_call.1} parent=1 // pred_region
      %74 = dma.done [#allocation6], 32
    $region29: #{tpu_custom_call.1} parent=1 // pred_fallthru
      _
    // Predicated region
    $region30: #{tpu_custom_call.1} parent=1 // pred_check
      _
    $region31: #{tpu_custom_call.1} parent=1 // pred_check_branch
      %76 = sbr.rel (0) target = $region33
    $region32: #{tpu_custom_call.1} parent=1 // pred_region
      %78 = dma.done [#allocation9], 1024
    $region33: #{tpu_custom_call.1} parent=1 // pred_fallthru
      _
    %v79 = vld [vmem:[#allocation2] sm:$0xf]
    %v80 = vld [vmem:[#allocation2 + $0x4] sm:$0xf]
    %v81 = vld [vmem:[#allocation7] sm:$0x3]
    %v82 = vld [vmem:[#allocation5] sm:$0xff]
    %v83 = vld [vmem:[#allocation5 + $0x8] sm:$0xff]
    %v84 = vld [vmem:[#allocation5 + $0x10] sm:$0xff]
    %v85 = vld [vmem:[#allocation5 + $0x18] sm:$0xff]
    %v86 = vld [vmem:[#allocation5 + $0x20] sm:$0xff]
    %v87 = vld [vmem:[#allocation5 + $0x28] sm:$0xff]
    %v88 = vld [vmem:[#allocation5 + $0x30] sm:$0xff]
    %v89 = vld [vmem:[#allocation5 + $0x38] sm:$0xff]
    %v90 = vld [vmem:[#allocation5 + $0x40] sm:$0xff]
    %v91 = vld [vmem:[#allocation5 + $0x48] sm:$0xff]
    %v92 = vld [vmem:[#allocation5 + $0x50] sm:$0xff]
    %v93 = vld [vmem:[#allocation5 + $0x58] sm:$0xff]
    %v94 = vld [vmem:[#allocation5 + $0x60] sm:$0xff]
    %v95 = vld [vmem:[#allocation5 + $0x68] sm:$0xff]
    %v96 = vld [vmem:[#allocation5 + $0x70] sm:$0xff]
    %v97 = vld [vmem:[#allocation5 + $0x78] sm:$0xff]
    %v99 = vperm.slane %v81, 0
    %v100 = vperm.slane %v81, 1
    %v105 = vunpack.c.l.b16 %v79
    %v106 = vunpack.c.l.b16 %v80
    %v107 = vpack.c.b16 %v106, %v105
    %v125 = vunpack.c.l.b16 %v82
    %v126 = vunpack.c.h.b16 %v82
    %v127 = vunpack.c.l.b16 %v83
    %v128 = vunpack.c.h.b16 %v83
    %v129 = vunpack.c.l.b16 %v84
    %v130 = vunpack.c.h.b16 %v84
    %v131 = vunpack.c.l.b16 %v85
    %v132 = vunpack.c.h.b16 %v85
    %v133 = vunpack.c.l.b16 %v86
    %v134 = vunpack.c.h.b16 %v86
    %v135 = vunpack.c.l.b16 %v87
    %v136 = vunpack.c.h.b16 %v87
    %v137 = vunpack.c.l.b16 %v88
    %v138 = vunpack.c.h.b16 %v88
    %v139 = vunpack.c.l.b16 %v89
    %v140 = vunpack.c.h.b16 %v89
    %v141 = vunpack.c.l.b16 %v90
    %v142 = vunpack.c.h.b16 %v90
    %v143 = vunpack.c.l.b16 %v91
    %v144 = vunpack.c.h.b16 %v91
    %v145 = vunpack.c.l.b16 %v92
    %v146 = vunpack.c.h.b16 %v92
    %v147 = vunpack.c.l.b16 %v93
    %v148 = vunpack.c.h.b16 %v93
    %v149 = vunpack.c.l.b16 %v94
    %v150 = vunpack.c.h.b16 %v94
    %v151 = vunpack.c.l.b16 %v95
    %v152 = vunpack.c.h.b16 %v95
    %v153 = vunpack.c.l.b16 %v96
    %v154 = vunpack.c.h.b16 %v96
    %v155 = vunpack.c.l.b16 %v97
    %v156 = vunpack.c.h.b16 %v97
    %v157 = vpack.c.b16 %v127, %v125
    %v158 = vpack.c.b16 %v128, %v126
    %v159 = vpack.c.b16 %v131, %v129
    %v160 = vpack.c.b16 %v132, %v130
    %v161 = vpack.c.b16 %v135, %v133
    %v162 = vpack.c.b16 %v136, %v134
    %v163 = vpack.c.b16 %v139, %v137
    %v164 = vpack.c.b16 %v140, %v138
    %v165 = vpack.c.b16 %v143, %v141
    %v166 = vpack.c.b16 %v144, %v142
    %v167 = vpack.c.b16 %v147, %v145
    %v168 = vpack.c.b16 %v148, %v146
    %v169 = vpack.c.b16 %v151, %v149
    %v170 = vpack.c.b16 %v152, %v150
    %v171 = vpack.c.b16 %v155, %v153
    %v172 = vpack.c.b16 %v156, %v154
    %189 = vmatpush.bf16.msra.mxu0 %v171
    %190 = vmatpush.bf16.msra.mxu0 %v169
    %191 = vmatpush.bf16.msra.mxu0 %v167
    %192 = vmatpush.bf16.msra.mxu0 %v165
    %193 = vmatpush.bf16.msra.mxu0 %v163
    %194 = vmatpush.bf16.msra.mxu0 %v161
    %195 = vmatpush.bf16.msra.mxu0 %v159
    %196 = vmatpush.bf16.msra.mxu0 %v157
    %197 = vmatmul.bf16.gmra.mxu0 %v107
    %v198 = vpop.f32.mrf.mxu0
    %v199 = vadd.f32 %v99, %v198
    %v200 = vpop.f32.mrf.mxu0
    %v201 = vadd.f32 %v99, %v200
    %202 = vdwg.mxu0
    %203 = vmatpush.bf16.msra.mxu0 %v172
    %204 = vmatpush.bf16.msra.mxu0 %v170
    %205 = vmatpush.bf16.msra.mxu0 %v168
    %206 = vmatpush.bf16.msra.mxu0 %v166
    %207 = vmatpush.bf16.msra.mxu0 %v164
    %208 = vmatpush.bf16.msra.mxu0 %v162
    %209 = vmatpush.bf16.msra.mxu0 %v160
    %210 = vmatpush.bf16.msra.mxu0 %v158
    %211 = vmatmul.bf16.gmra.mxu0 %v107
    %v212 = vpop.f32.mrf.mxu0
    %v213 = vadd.f32 %v100, %v212
    %v214 = vpop.f32.mrf.mxu0
    %v215 = vadd.f32 %v100, %v214
    %216 = vdwg.mxu0
    %v217 = vmax.f32 %v199, 0.0
    %v218 = vmax.f32 %v201, 0.0
    %v219 = vpack.c.bf16 %v218, %v217
    %v220 = vld [vmem:[#allocation8] sm:$0xf]
    %v221 = vld [vmem:[#allocation8 + $0x4] sm:$0xf]
    %v222 = vld [vmem:[#allocation8 + $0x8] sm:$0xf]
    %v223 = vld [vmem:[#allocation8 + $0xc] sm:$0xf]
    %v224 = vld [vmem:[#allocation8 + $0x10] sm:$0xf]
    %v225 = vld [vmem:[#allocation8 + $0x14] sm:$0xf]
    %v226 = vld [vmem:[#allocation8 + $0x18] sm:$0xf]
    %v227 = vld [vmem:[#allocation8 + $0x1c] sm:$0xf]
    %v228 = vld [vmem:[#allocation8 + $0x20] sm:$0xf]
    %v229 = vld [vmem:[#allocation8 + $0x24] sm:$0xf]
    %v230 = vld [vmem:[#allocation8 + $0x28] sm:$0xf]
    %v231 = vld [vmem:[#allocation8 + $0x2c] sm:$0xf]
    %v232 = vld [vmem:[#allocation8 + $0x30] sm:$0xf]
    %v233 = vld [vmem:[#allocation8 + $0x34] sm:$0xf]
    %v234 = vld [vmem:[#allocation8 + $0x38] sm:$0xf]
    %v235 = vld [vmem:[#allocation8 + $0x3c] sm:$0xf]
    %v252 = vunpack.c.l.b16 %v220
    %v253 = vunpack.c.l.b16 %v221
    %v254 = vunpack.c.l.b16 %v222
    %v255 = vunpack.c.l.b16 %v223
    %v256 = vunpack.c.l.b16 %v224
    %v257 = vunpack.c.l.b16 %v225
    %v258 = vunpack.c.l.b16 %v226
    %v259 = vunpack.c.l.b16 %v227
    %v260 = vunpack.c.l.b16 %v228
    %v261 = vunpack.c.l.b16 %v229
    %v262 = vunpack.c.l.b16 %v230
    %v263 = vunpack.c.l.b16 %v231
    %v264 = vunpack.c.l.b16 %v232
    %v265 = vunpack.c.l.b16 %v233
    %v266 = vunpack.c.l.b16 %v234
    %v267 = vunpack.c.l.b16 %v235
    %v268 = vpack.c.b16 %v253, %v252
    %v269 = vpack.c.b16 %v255, %v254
    %v270 = vpack.c.b16 %v257, %v256
    %v271 = vpack.c.b16 %v259, %v258
    %v272 = vpack.c.b16 %v261, %v260
    %v273 = vpack.c.b16 %v263, %v262
    %v274 = vpack.c.b16 %v265, %v264
    %v275 = vpack.c.b16 %v267, %v266
    %284 = vmatpush.bf16.msra.mxu0 %v275
    %285 = vmatpush.bf16.msra.mxu0 %v274
    %286 = vmatpush.bf16.msra.mxu0 %v273
    %287 = vmatpush.bf16.msra.mxu0 %v272
    %288 = vmatpush.bf16.msra.mxu0 %v271
    %289 = vmatpush.bf16.msra.mxu0 %v270
    %290 = vmatpush.bf16.msra.mxu0 %v269
    %291 = vmatpush.bf16.msra.mxu0 %v268
    %292 = vmatmul.bf16.gmra.mxu0 %v219
    %v293 = vpop.f32.mrf.mxu0
    %v294 = vadd.f32 %v213, %v293
    %v295 = vpop.f32.mrf.mxu0
    %v296 = vadd.f32 %v215, %v295
    %297 = vdwg.mxu0
    %v298 = vmax.f32 %v294, 0.0
    %v299 = vmax.f32 %v296, 0.0
    %300 = vst [vmem:[#allocation10] sm:$0xff] %v298
    %301 = vst [vmem:[#allocation10 + $0x8] sm:$0xff] %v299
    // Predicated region
    $region34: #{tpu_custom_call.1} parent=1 // pred_check
      _
    $region35: #{tpu_custom_call.1} parent=1 // pred_check_branch
      %303 = sbr.rel (0) target = $region37
    $region36: #{tpu_custom_call.1} parent=1 // pred_region
      %305 = vsyncadd [#allocation4], 0
      %s306 = sshll.u32 [#allocation10], 4
      %s307 = int_to_ptr.vmem [resolvable:$true] %s306
      %s308 = sshll.u32 %s4, 4
      %s309 = int_to_ptr.hbm [resolvable:$true] %s308
      %314 = dma.vmem_to_hbm [thread:$0]  %s307, 256, %s309, [#allocation4], 128, 128, 8
    $region37: #{tpu_custom_call.1} parent=1 // pred_fallthru
      _
    // Predicated region
    $region38: #{tpu_custom_call.1} parent=1 // pred_check
      _
    $region39: #{tpu_custom_call.1} parent=1 // pred_check_branch
      %316 = sbr.rel (0) target = $region41
    $region40: #{tpu_custom_call.1} parent=1 // pred_region
      %318 = dma.done [#allocation4], 256
    $region41: #{tpu_custom_call.1} parent=1 // pred_fallthru
      _
    %319 = vsyncpa [#allocation3], 1
    %320 = vsyncpa [#allocation6], 1
    %321 = vsyncpa [#allocation9], 1
    %322 = vsyncpa [#allocation4], 1

// kernel: tpu_custom_call.1
$region0: #{tpu_custom_call.1}
  #allocation0 [shape = 'u32[]', space=smem, size = 0x4, offset = 0x4, fixed_abs, tag = 'smem constant byte address 0x4 - core index']
  #allocation1 [shape = 'u32[72,128]{1,0:T(1,128)}', space=vmem, size = 0x9000, scoped, tag = 'internal scratch']
  %s0 = inlined_call_operand.hbm [shape: bf16[16,128], index: 0, kind: input, shape index: {}]
  %s1 = inlined_call_operand.hbm [shape: bf16[128,256], index: 1, kind: input, shape index: {}]
  %s2 = inlined_call_operand.hbm [shape: f32[1,256], index: 2, kind: input, shape index: {}]
  %s3 = inlined_call_operand.hbm [shape: bf16[128,128], index: 3, kind: input, shape index: {}]
  %s4 = inlined_call_operand.hbm [shape: f32[16,128], index: 4, kind: output, shape index: {}]
  %s5 = sld [smem:[#allocation0]]
  $region42: #{tpu_custom_call.1} parent=0
    _
  %s7 = ssub.s32 1, %s5
  %s8 = scalar_select 0, %s7, %s5
  $region1: #{tpu_custom_call.1} parent=0
    #allocation2 [shape = 'u8[4096]{0}', space=vmem, size = 0x1000, scoped, tag = 'input window, operand 0, single buffered']
    #allocation3 [shape = 's32[1]{0}', space=sflag, size = 0x4, scoped, tag = 'scoped memory for tpu_custom_call.1']
    #allocation4 [shape = 's32[1]{0}', space=sflag, size = 0x4, scoped, tag = 'scoped memory for tpu_custom_call.1']
    #allocation5 [shape = 'u8[65536]{0}', space=vmem, size = 0x10000, scoped, tag = 'input window, operand 1, single buffered']
    #allocation6 [shape = 's32[1]{0}', space=sflag, size = 0x4, scoped, tag = 'scoped memory for tpu_custom_call.1']
    #allocation7 [shape = 'u8[1024]{0}', space=vmem, size = 0x400, scoped, tag = 'input window, operand 2, single buffered']
    #allocation8 [shape = 'u8[32768]{0}', space=vmem, size = 0x8000, scoped, tag = 'input window, operand 3, single buffered']
    #allocation9 [shape = 's32[1]{0}', space=sflag, size = 0x4, scoped, tag = 'scoped memory for tpu_custom_call.1']
    #allocation10 [shape = 'u8[8192]{0}', space=vmem, size = 0x2000, scoped, tag = 'output window, operand 0, single buffered']
    %9 = vsyncpa [#allocation3], 0
    %10 = vsyncpa [#allocation6], 0
    %11 = vsyncpa [#allocation9], 0
    %12 = vsyncpa [#allocation4], 0
    // Predicated region
    $region2: #{tpu_custom_call.1} parent=1 // pred_check
      _
    $region3: #{tpu_custom_call.1} parent=1 // pred_check_branch
      %14 = sbr.rel (0) target = $region5
    $region4: #{tpu_custom_call.1} parent=1 // pred_region
      %16 = vsyncadd [#allocation3], 0
      %s17 = sshll.u32 %s0, 4
      %s18 = int_to_ptr.hbm [resolvable:$true] %s17
      %s19 = sshll.u32 [#allocation2], 4
      %s20 = int_to_ptr.vmem [resolvable:$true] %s19
      %25 = dma.hbm_to_vmem [thread:$0]  %s18, 128, %s20, [#allocation3], 64, 64, 4
    $region5: #{tpu_custom_call.1} parent=1 // pred_fallthru
      _
    // Predicated region
    $region6: #{tpu_custom_call.1} parent=1 // pred_check
      _
    $region7: #{tpu_custom_call.1} parent=1 // pred_check_branch
      %27 = sbr.rel (0) target = $region9
    $region8: #{tpu_custom_call.1} parent=1 // pred_region
      %29 = vsyncadd [#allocation6], 0
      %s30 = sshll.u32 %s1, 4
      %s31 = int_to_ptr.hbm [resolvable:$true] %s30
      %s32 = sshll.u32 [#allocation5], 4
      %s33 = int_to_ptr.vmem [resolvable:$true] %s32
      %38 = dma.hbm_to_vmem [thread:$0]  %s31, 2048, %s33, [#allocation6], 128, 128, 8
    $region9: #{tpu_custom_call.1} parent=1 // pred_fallthru
      _
    // Predicated region
    $region10: #{tpu_custom_call.1} parent=1 // pred_check
      _
    $region11: #{tpu_custom_call.1} parent=1 // pred_check_branch
      %40 = sbr.rel (0) target = $region13
    $region12: #{tpu_custom_call.1} parent=1 // pred_region
      %42 = vsyncadd [#allocation6], 0
      %s44 = sshll.u32 %s2, 4
      %s45 = int_to_ptr.hbm [resolvable:$true] %s44
      %s46 = sshll.u32 [#allocation7], 4
      %s47 = int_to_ptr.vmem [resolvable:$true] %s46
      %49 = dma.hbm_to_vmem [thread:$0]  %s45, 32, %s47, [#allocation6]
    $region13: #{tpu_custom_call.1} parent=1 // pred_fallthru
      _
    // Predicated region
    $region14: #{tpu_custom_call.1} parent=1 // pred_check
      _
    $region15: #{tpu_custom_call.1} parent=1 // pred_check_branch
      %51 = sbr.rel (0) target = $region17
    $region16: #{tpu_custom_call.1} parent=1 // pred_region
      %53 = vsyncadd [#allocation9], 0
      %s54 = sshll.u32 %s3, 4
      %s55 = int_to_ptr.hbm [resolvable:$true] %s54
      %s56 = sshll.u32 [#allocation8], 4
      %s57 = int_to_ptr.vmem [resolvable:$true] %s56
      %62 = dma.hbm_to_vmem [thread:$0]  %s55, 1024, %s57, [#allocation9], 64, 64, 4
    $region17: #{tpu_custom_call.1} parent=1 // pred_fallthru
      _
    // Predicated region
    $region18: #{tpu_custom_call.1} parent=1 // pred_check
      _
    $region19: #{tpu_custom_call.1} parent=1 // pred_check_branch
      %64 = sbr.rel (0) target = $region21
    $region20: #{tpu_custom_call.1} parent=1 // pred_region
      %66 = dma.done [#allocation3], 128
    $region21: #{tpu_custom_call.1} parent=1 // pred_fallthru
      _
    // Predicated region
    $region22: #{tpu_custom_call.1} parent=1 // pred_check
      _
    $region23: #{tpu_custom_call.1} parent=1 // pred_check_branch
      %68 = sbr.rel (0) target = $region25
    $region24: #{tpu_custom_call.1} parent=1 // pred_region
      %70 = dma.done [#allocation6], 2048
    $region25: #{tpu_custom_call.1} parent=1 // pred_fallthru
      _
    // Predicated region
    $region26: #{tpu_custom_call.1} parent=1 // pred_check
      _
    $region27: #{tpu_custom_call.1} parent=1 // pred_check_branch
      %72 = sbr.rel (0) target = $region29
    $region28: #{tpu_custom_call.1} parent=1 // pred_region
      %74 = dma.done [#allocation6], 32
    $region29: #{tpu_custom_call.1} parent=1 // pred_fallthru
      _
    // Predicated region
    $region30: #{tpu_custom_call.1} parent=1 // pred_check
      _
    $region31: #{tpu_custom_call.1} parent=1 // pred_check_branch
      %76 = sbr.rel (0) target = $region33
    $region32: #{tpu_custom_call.1} parent=1 // pred_region
      %78 = dma.done [#allocation9], 1024
    $region33: #{tpu_custom_call.1} parent=1 // pred_fallthru
      _
    %v79 = vld [vmem:[#allocation2] sm:$0xf]
    %v80 = vld [vmem:[#allocation2 + $0x4] sm:$0xf]
    %v81 = vld [vmem:[#allocation7] sm:$0x3]
    %v82 = vld [vmem:[#allocation5] sm:$0xff]
    %v83 = vld [vmem:[#allocation5 + $0x8] sm:$0xff]
    %v84 = vld [vmem:[#allocation5 + $0x10] sm:$0xff]
    %v85 = vld [vmem:[#allocation5 + $0x18] sm:$0xff]
    %v86 = vld [vmem:[#allocation5 + $0x20] sm:$0xff]
    %v87 = vld [vmem:[#allocation5 + $0x28] sm:$0xff]
    %v88 = vld [vmem:[#allocation5 + $0x30] sm:$0xff]
    %v89 = vld [vmem:[#allocation5 + $0x38] sm:$0xff]
    %v90 = vld [vmem:[#allocation5 + $0x40] sm:$0xff]
    %v91 = vld [vmem:[#allocation5 + $0x48] sm:$0xff]
    %v92 = vld [vmem:[#allocation5 + $0x50] sm:$0xff]
    %v93 = vld [vmem:[#allocation5 + $0x58] sm:$0xff]
    %v94 = vld [vmem:[#allocation5 + $0x60] sm:$0xff]
    %v95 = vld [vmem:[#allocation5 + $0x68] sm:$0xff]
    %v96 = vld [vmem:[#allocation5 + $0x70] sm:$0xff]
    %v97 = vld [vmem:[#allocation5 + $0x78] sm:$0xff]
    %v99 = vperm.slane %v81, 0
    %v100 = vperm.slane %v81, 1
    %v105 = vunpack.c.l.b16 %v79
    %v106 = vunpack.c.l.b16 %v80
    %v107 = vpack.c.b16 %v106, %v105
    %v125 = vunpack.c.l.b16 %v82
    %v126 = vunpack.c.h.b16 %v82
    %v127 = vunpack.c.l.b16 %v83
    %v128 = vunpack.c.h.b16 %v83
    %v129 = vunpack.c.l.b16 %v84
    %v130 = vunpack.c.h.b16 %v84
    %v131 = vunpack.c.l.b16 %v85
    %v132 = vunpack.c.h.b16 %v85
    %v133 = vunpack.c.l.b16 %v86
    %v134 = vunpack.c.h.b16 %v86
    %v135 = vunpack.c.l.b16 %v87
    %v136 = vunpack.c.h.b16 %v87
    %v137 = vunpack.c.l.b16 %v88
    %v138 = vunpack.c.h.b16 %v88
    %v139 = vunpack.c.l.b16 %v89
    %v140 = vunpack.c.h.b16 %v89
    %v141 = vunpack.c.l.b16 %v90
    %v142 = vunpack.c.h.b16 %v90
    %v143 = vunpack.c.l.b16 %v91
    %v144 = vunpack.c.h.b16 %v91
    %v145 = vunpack.c.l.b16 %v92
    %v146 = vunpack.c.h.b16 %v92
    %v147 = vunpack.c.l.b16 %v93
    %v148 = vunpack.c.h.b16 %v93
    %v149 = vunpack.c.l.b16 %v94
    %v150 = vunpack.c.h.b16 %v94
    %v151 = vunpack.c.l.b16 %v95
    %v152 = vunpack.c.h.b16 %v95
    %v153 = vunpack.c.l.b16 %v96
    %v154 = vunpack.c.h.b16 %v96
    %v155 = vunpack.c.l.b16 %v97
    %v156 = vunpack.c.h.b16 %v97
    %v157 = vpack.c.b16 %v127, %v125
    %v158 = vpack.c.b16 %v128, %v126
    %v159 = vpack.c.b16 %v131, %v129
    %v160 = vpack.c.b16 %v132, %v130
    %v161 = vpack.c.b16 %v135, %v133
    %v162 = vpack.c.b16 %v136, %v134
    %v163 = vpack.c.b16 %v139, %v137
    %v164 = vpack.c.b16 %v140, %v138
    %v165 = vpack.c.b16 %v143, %v141
    %v166 = vpack.c.b16 %v144, %v142
    %v167 = vpack.c.b16 %v147, %v145
    %v168 = vpack.c.b16 %v148, %v146
    %v169 = vpack.c.b16 %v151, %v149
    %v170 = vpack.c.b16 %v152, %v150
    %v171 = vpack.c.b16 %v155, %v153
    %v172 = vpack.c.b16 %v156, %v154
    %189 = vmatpush.bf16.msra.mxu0 %v171
    %190 = vmatpush.bf16.msra.mxu0 %v169
    %191 = vmatpush.bf16.msra.mxu0 %v167
    %192 = vmatpush.bf16.msra.mxu0 %v165
    %193 = vmatpush.bf16.msra.mxu0 %v163
    %194 = vmatpush.bf16.msra.mxu0 %v161
    %195 = vmatpush.bf16.msra.mxu0 %v159
    %196 = vmatpush.bf16.msra.mxu0 %v157
    %197 = vmatmul.bf16.gmra.mxu0 %v107
    %v198 = vpop.f32.mrf.mxu0
    %v199 = vadd.f32 %v99, %v198
    %v200 = vpop.f32.mrf.mxu0
    %v201 = vadd.f32 %v99, %v200
    %202 = vdwg.mxu0
    %203 = vmatpush.bf16.msra.mxu0 %v172
    %204 = vmatpush.bf16.msra.mxu0 %v170
    %205 = vmatpush.bf16.msra.mxu0 %v168
    %206 = vmatpush.bf16.msra.mxu0 %v166
    %207 = vmatpush.bf16.msra.mxu0 %v164
    %208 = vmatpush.bf16.msra.mxu0 %v162
    %209 = vmatpush.bf16.msra.mxu0 %v160
    %210 = vmatpush.bf16.msra.mxu0 %v158
    %211 = vmatmul.bf16.gmra.mxu0 %v107
    %v212 = vpop.f32.mrf.mxu0
    %v213 = vadd.f32 %v100, %v212
    %v214 = vpop.f32.mrf.mxu0
    %v215 = vadd.f32 %v100, %v214
    %216 = vdwg.mxu0
    %v217 = vmax.f32 %v199, 0.0
    %v218 = vmax.f32 %v201, 0.0
    %v219 = vpack.c.bf16 %v218, %v217
    %v220 = vld [vmem:[#allocation8] sm:$0xf]
    %v221 = vld [vmem:[#allocation8 + $0x4] sm:$0xf]
    %v222 = vld [vmem:[#allocation8 + $0x8] sm:$0xf]
    %v223 = vld [vmem:[#allocation8 + $0xc] sm:$0xf]
    %v224 = vld [vmem:[#allocation8 + $0x10] sm:$0xf]
    %v225 = vld [vmem:[#allocation8 + $0x14] sm:$0xf]
    %v226 = vld [vmem:[#allocation8 + $0x18] sm:$0xf]
    %v227 = vld [vmem:[#allocation8 + $0x1c] sm:$0xf]
    %v228 = vld [vmem:[#allocation8 + $0x20] sm:$0xf]
    %v229 = vld [vmem:[#allocation8 + $0x24] sm:$0xf]
    %v230 = vld [vmem:[#allocation8 + $0x28] sm:$0xf]
    %v231 = vld [vmem:[#allocation8 + $0x2c] sm:$0xf]
    %v232 = vld [vmem:[#allocation8 + $0x30] sm:$0xf]
    %v233 = vld [vmem:[#allocation8 + $0x34] sm:$0xf]
    %v234 = vld [vmem:[#allocation8 + $0x38] sm:$0xf]
    %v235 = vld [vmem:[#allocation8 + $0x3c] sm:$0xf]
    %v252 = vunpack.c.l.b16 %v220
    %v253 = vunpack.c.l.b16 %v221
    %v254 = vunpack.c.l.b16 %v222
    %v255 = vunpack.c.l.b16 %v223
    %v256 = vunpack.c.l.b16 %v224
    %v257 = vunpack.c.l.b16 %v225
    %v258 = vunpack.c.l.b16 %v226
    %v259 = vunpack.c.l.b16 %v227
    %v260 = vunpack.c.l.b16 %v228
    %v261 = vunpack.c.l.b16 %v229
    %v262 = vunpack.c.l.b16 %v230
    %v263 = vunpack.c.l.b16 %v231
    %v264 = vunpack.c.l.b16 %v232
    %v265 = vunpack.c.l.b16 %v233
    %v266 = vunpack.c.l.b16 %v234
    %v267 = vunpack.c.l.b16 %v235
    %v268 = vpack.c.b16 %v253, %v252
    %v269 = vpack.c.b16 %v255, %v254
    %v270 = vpack.c.b16 %v257, %v256
    %v271 = vpack.c.b16 %v259, %v258
    %v272 = vpack.c.b16 %v261, %v260
    %v273 = vpack.c.b16 %v263, %v262
    %v274 = vpack.c.b16 %v265, %v264
    %v275 = vpack.c.b16 %v267, %v266
    %284 = vmatpush.bf16.msra.mxu0 %v275
    %285 = vmatpush.bf16.msra.mxu0 %v274
    %286 = vmatpush.bf16.msra.mxu0 %v273
    %287 = vmatpush.bf16.msra.mxu0 %v272
    %288 = vmatpush.bf16.msra.mxu0 %v271
    %289 = vmatpush.bf16.msra.mxu0 %v270
    %290 = vmatpush.bf16.msra.mxu0 %v269
    %291 = vmatpush.bf16.msra.mxu0 %v268
    %292 = vmatmul.bf16.gmra.mxu0 %v219
    %v293 = vpop.f32.mrf.mxu0
    %v294 = vadd.f32 %v213, %v293
    %v295 = vpop.f32.mrf.mxu0
    %v296 = vadd.f32 %v215, %v295
    %297 = vdwg.mxu0
    %v298 = vmax.f32 %v294, 0.0
    %v299 = vmax.f32 %v296, 0.0
    %300 = vst [vmem:[#allocation10] sm:$0xff] %v298
    %301 = vst [vmem:[#allocation10 + $0x8] sm:$0xff] %v299
    // Predicated region
    $region34: #{tpu_custom_call.1} parent=1 // pred_check
      _
    $region35: #{tpu_custom_call.1} parent=1 // pred_check_branch
      %303 = sbr.rel (0) target = $region37
    $region36: #{tpu_custom_call.1} parent=1 // pred_region
      %305 = vsyncadd [#allocation4], 0
      %s306 = sshll.u32 [#allocation10], 4
      %s307 = int_to_ptr.vmem [resolvable:$true] %s306
      %s308 = sshll.u32 %s4, 4
      %s309 = int_to_ptr.hbm [resolvable:$true] %s308
      %314 = dma.vmem_to_hbm [thread:$0]  %s307, 256, %s309, [#allocation4], 128, 128, 8
    $region37: #{tpu_custom_call.1} parent=1 // pred_fallthru
      _
    // Predicated region
    $region38: #{tpu_custom_call.1} parent=1 // pred_check
      _
    $region39: #{tpu_custom_call.1} parent=1 // pred_check_branch
      %316 = sbr.rel (0) target = $region41
    $region40: #{tpu_custom_call.1} parent=1 // pred_region
      %318 = dma.done [#allocation4], 256
    $region41: #{tpu_custom_call.1} parent=1 // pred_fallthru
      _
    %319 = vsyncpa [#allocation3], 1
    %320 = vsyncpa [#allocation6], 1
    %321 = vsyncpa [#allocation9], 1
    %322 = vsyncpa [#allocation4], 1

</llo_original>
